<compile_context>
chip_gen: v6e
topology: v6e:2x2x1
jax: 0.10.0
libtpu: 0.0.40
codegen_flags: <defaults>
</compile_context>

<pallas_src>
import functools

import jax
import jax.numpy as jnp
from jax.experimental import pallas as pl
from jax.experimental.pallas import tpu as pltpu


LANE = 128      # TPU lane width: matmul N-dim (C_out) padded to a multiple.
SUBLANE = 8     # sublane granularity for the row (M) dimension.


def _round_up(x, m):
    return ((x + m - 1) // m) * m


# ----------------------------- Pallas kernel ------------------------------- #

def _gemm_bias_kernel(lhs_ref, w_ref, b_ref, o_ref):
    """One (tm, K) @ (K, C_out_pad) MXU matmul + f32 bias, bf16 store.

    lhs_ref : (tm, K)          bf16  im2col rows for this tile
    w_ref   : (K, C_out_pad)   bf16  flattened conv weight (grid-invariant)
    b_ref   : (1, C_out_pad)   f32   bias row (grid-invariant)
    o_ref   : (tm, C_out_pad)  bf16  output rows for this tile
    """
    acc = jnp.dot(lhs_ref[...], w_ref[...], preferred_element_type=jnp.float32)
    o_ref[...] = (acc + b_ref[...]).astype(o_ref.dtype)


# ------------------------------ JAX glue ----------------------------------- #

def _pick_row_tile(m_total):
    """Row-tile size: multiple of 8, <=1024, and >=2 grid steps when possible."""
    tm = min(1024, _round_up(m_total, SUBLANE))
    if m_total > SUBLANE and _round_up(m_total, tm) // tm < 2:
        tm = max(SUBLANE, _round_up((m_total + 1) // 2, SUBLANE))
    return tm


def _im2col(x_nhwc, kh, kw, sh, sw, ph, pw, h_out, w_out):
    """(N, H, W, C_in) -> (N*H_out*W_out, kh*kw*C_in), K ordered (kh, kw, C_in)."""
    n, _, _, c_in = x_nhwc.shape
    x_pad = jnp.pad(x_nhwc, ((0, 0), (ph, ph), (pw, pw), (0, 0)))
    taps = []
    for i in range(kh):
        for j in range(kw):
            taps.append(x_pad[:, i:i + sh * (h_out - 1) + 1:sh,
                              j:j + sw * (w_out - 1) + 1:sw, :])
    patches = jnp.stack(taps, axis=3)            # (N, H_out, W_out, kh*kw, C_in)
    return patches.reshape(n * h_out * w_out, kh * kw * c_in)


@functools.partial(jax.jit, static_argnames=("kernel_size", "stride", "padding"))
def my_conv2d(x, weight, bias, *, kernel_size, stride, padding):
    """Forward of MyConv2d.  x: (N, C_in, H, W) -> (N, C_out, H_out, W_out)."""
    if isinstance(kernel_size, int):
        kernel_size = (kernel_size, kernel_size)
    if isinstance(stride, int):
        stride = (stride, stride)
    if isinstance(padding, int):
        padding = (padding, padding)

    N, C_in, H, W = x.shape
    C_out = weight.shape[0]
    kh, kw = kernel_size
    sh, sw = stride
    ph, pw = padding
    H_out = (H + 2 * ph - kh) // sh + 1
    W_out = (W + 2 * pw - kw) // sw + 1

    K = kh * kw * C_in
    C_out_pad = max(LANE, _round_up(C_out, LANE))
    M = N * H_out * W_out
    tm = _pick_row_tile(M)
    M_pad = _round_up(M, tm)

    # --- wrapper-side glue (bf16, so these passes are half-width) -----------
    x_nhwc = jnp.transpose(x, (0, 2, 3, 1)).astype(jnp.bfloat16)
    lhs = _im2col(x_nhwc, kh, kw, sh, sw, ph, pw, H_out, W_out)   # (M, K) bf16
    lhs = jnp.pad(lhs, ((0, M_pad - M), (0, 0)))

    # weight (C_out, C_in, kh, kw) -> (kh*kw*C_in, C_out_pad), K order (kh, kw, C_in)
    w_mat = jnp.transpose(weight, (2, 3, 1, 0)).reshape(K, C_out)
    w_mat = jnp.pad(w_mat, ((0, 0), (0, C_out_pad - C_out))).astype(jnp.bfloat16)

    if bias is None:
        b_row = jnp.zeros((1, C_out_pad), jnp.float32)
    else:
        b_row = jnp.pad(bias.astype(jnp.float32),
                        (0, C_out_pad - C_out)).reshape(1, C_out_pad)

    # VMEM budget from the actual blocks: 2x double-buffered streamed blocks
    # plus the (double-buffered by default) resident weight/bias, with margin.
    lhs_blk = tm * LANE * 2 if K < LANE else tm * K * 2   # lane-padded in VMEM
    out_blk = tm * C_out_pad * 2
    resident = K * C_out_pad * 2 + C_out_pad * 4
    need = 2 * (lhs_blk + out_blk) + 2 * resident
    vmem_limit = int(min(max(2 * need + (8 << 20), 32 << 20), 56 << 20))

    y_rows = pl.pallas_call(
        _gemm_bias_kernel,
        out_shape=jax.ShapeDtypeStruct((M_pad, C_out_pad), jnp.bfloat16),
        grid_spec=pltpu.PrefetchScalarGridSpec(
            num_scalar_prefetch=0,
            grid=(M_pad // tm,),
            in_specs=[
                pl.BlockSpec((tm, K), lambda m: (m, 0)),
                # TODO(synk): pipeline_mode=pl.Buffered(1) on the two
                # grid-invariant operands below would skip their second buffer
                # on newer jax; omitted for wider jax-version compatibility.
                pl.BlockSpec((K, C_out_pad), lambda m: (0, 0)),
                pl.BlockSpec((1, C_out_pad), lambda m: (0, 0)),
            ],
            out_specs=pl.BlockSpec((tm, C_out_pad), lambda m: (m, 0)),
        ),
        compiler_params=pltpu.CompilerParams(
            # One fused batch*space axis: both v7x TCs stay busy even at N=1.
            dimension_semantics=("parallel",),
            vmem_limit_bytes=vmem_limit,
        ),
    )(lhs, w_mat, b_row)

    y = y_rows[:M, :C_out].reshape(N, H_out, W_out, C_out)
    # NCHW contract of the reference module; cast back to caller dtype here so
    # the kernel writeback stays bf16.
    # TODO(synk): returning NHWC would save this final transpose HBM pass, but
    # the reference module's contract is NCHW.
    return jnp.transpose(y, (0, 3, 1, 2)).astype(x.dtype)


# ------------------------------ Demo / check -------------------------------- #

if __name__ == "__main__":
    # Small shapes consistent with the module's forward.
    N, C_in, H, W = 2, 4, 16, 16
    C_out = 8
    kernel_size = (3, 3)
    stride = (1, 1)
    padding = (1, 1)

    key = jax.random.PRNGKey(0)
    kx, kw_key = jax.random.split(key)

    x = jax.random.normal(kx, (N, C_in, H, W), dtype=jnp.float32)

    # kaiming_normal_(mode="fan_out", nonlinearity="relu"):
    # std = sqrt(2 / fan_out), fan_out = C_out * kh * kw; bias zero-init.
    fan_out = C_out * kernel_size[0] * kernel_size[1]
    std = (2.0 / fan_out) ** 0.5
    weight = std * jax.random.normal(
        kw_key, (C_out, C_in, *kernel_size), dtype=jnp.float32
    )
    bias = jnp.zeros((C_out,), dtype=jnp.float32)

    # --- case 1: stride 1, padding 1, bias --------------------------------- #
    y = my_conv2d(
        x, weight, bias,
        kernel_size=kernel_size, stride=stride, padding=padding,
    )
    y = jax.block_until_ready(y)

    # Reference with matching bf16 MXU inputs + f32 accumulation.
    y_ref = jax.lax.conv_general_dilated(
        x.astype(jnp.bfloat16), weight.astype(jnp.bfloat16),
        window_strides=stride,
        padding=[(padding[0], padding[0]), (padding[1], padding[1])],
        dimension_numbers=("NCHW", "OIHW", "NCHW"),
        preferred_element_type=jnp.float32,
    ) + bias[None, :, None, None]

    assert y.shape == (N, C_out, H, W)
    assert jnp.allclose(y, y_ref, atol=2e-2, rtol=2e-2), \
        float(jnp.max(jnp.abs(y - y_ref)))

    # --- case 2: stride 2, no padding, no bias ------------------------------ #
    stride2, padding2 = (2, 2), (0, 0)
    y2 = my_conv2d(
        x, weight, None,
        kernel_size=kernel_size, stride=stride2, padding=padding2,
    )
    y2 = jax.block_until_ready(y2)

    y2_ref = jax.lax.conv_general_dilated(
        x.astype(jnp.bfloat16), weight.astype(jnp.bfloat16),
        window_strides=stride2, padding=[(0, 0), (0, 0)],
        dimension_numbers=("NCHW", "OIHW", "NCHW"),
        preferred_element_type=jnp.float32,
    )
    assert y2.shape == (N, C_out, 7, 7)
    assert jnp.allclose(y2, y2_ref, atol=2e-2, rtol=2e-2), \
        float(jnp.max(jnp.abs(y2 - y2_ref)))

    print("KERNEL_OK")
</pallas_src>

<mosaic_0001>
module attributes {stable_mosaic.version = 11 : i64} {
  func.func @_gemm_bias_kernel(%arg0: i32, %arg1: memref<256x36xbf16, #tpu.memory_space<vmem>>, %arg2: memref<36x128xbf16, #tpu.memory_space<vmem>>, %arg3: memref<1x128xf32, #tpu.memory_space<vmem>>, %arg4: memref<256x128xbf16, #tpu.memory_space<vmem>>) attributes {dimension_semantics = [#tpu.dimension_semantics<parallel>], iteration_bounds = array<i64: 2>, scalar_prefetch = 0 : i64, scratch_operands = 0 : i64, tpu.core_type = #tpu.core_type<tc>, window_params = [{transform_indices = @transform_0, window_bounds = array<i64: 256, 36>}, {pipeline_mode = #tpu.pipeline_mode<synchronous>, transform_indices = @transform_1, window_bounds = array<i64: 36, 128>}, {pipeline_mode = #tpu.pipeline_mode<synchronous>, transform_indices = @transform_2, window_bounds = array<i64: 1, 128>}, {transform_indices = @transform_3, window_bounds = array<i64: 256, 128>}]} {
    %c0 = arith.constant 0 : index
    %c0_0 = arith.constant 0 : index
    %0 = vector.load %arg1[%c0, %c0_0] : memref<256x36xbf16, #tpu.memory_space<vmem>>, vector<256x36xbf16>
    %c0_1 = arith.constant 0 : index
    %c0_2 = arith.constant 0 : index
    %1 = vector.load %arg2[%c0_1, %c0_2] : memref<36x128xbf16, #tpu.memory_space<vmem>>, vector<36x128xbf16>
    %cst = arith.constant dense<0.000000e+00> : vector<256x128xf32>
    %2 = tpu.matmul %0, %1, %cst {dimension_numbers = #tpu.dot_dimension_numbers<[1], [0], [0], [1], [0, 0, 1, 1], [], []>} : vector<256x36xbf16>, vector<36x128xbf16>, vector<256x128xf32> -> vector<256x128xf32>
    %c0_3 = arith.constant 0 : index
    %c0_4 = arith.constant 0 : index
    %3 = vector.load %arg3[%c0_3, %c0_4] : memref<1x128xf32, #tpu.memory_space<vmem>>, vector<1x128xf32>
    %4 = vector.broadcast %3 : vector<1x128xf32> to vector<256x128xf32>
    %5 = arith.addf %2, %4 : vector<256x128xf32>
    %6 = arith.truncf %5 : vector<256x128xf32> to vector<256x128xbf16>
    %c0_5 = arith.constant 0 : index
    %c0_6 = arith.constant 0 : index
    %7 = vector.load %arg4[%c0_5, %c0_6] : memref<256x128xbf16, #tpu.memory_space<vmem>>, vector<256x128xbf16>
    tpu.vector_store %arg4[%c0_5, %c0_6], %6 {strides = array<i32>} : memref<256x128xbf16, #tpu.memory_space<vmem>>, vector<256x128xbf16>,
    return
  }
  func.func @transform_0(%arg0: i32) -> (i32, i32) {
    %c0_i32 = arith.constant 0 : i32
    %c0_i32_0 = arith.constant 0 : i32
    return %arg0, %c0_i32 : i32, i32
  }
  func.func @transform_1(%arg0: i32) -> (i32, i32) {
    %c0_i32 = arith.constant 0 : i32
    %c0_i32_0 = arith.constant 0 : i32
    %c0_i32_1 = arith.constant 0 : i32
    return %c0_i32, %c0_i32_0 : i32, i32
  }
  func.func @transform_2(%arg0: i32) -> (i32, i32) {
    %c0_i32 = arith.constant 0 : i32
    %c0_i32_0 = arith.constant 0 : i32
    %c0_i32_1 = arith.constant 0 : i32
    return %c0_i32, %c0_i32_0 : i32, i32
  }
  func.func @transform_3(%arg0: i32) -> (i32, i32) {
    %c0_i32 = arith.constant 0 : i32
    %c0_i32_0 = arith.constant 0 : i32
    return %arg0, %c0_i32 : i32, i32
  }
}

</mosaic_0001>

<llo_original>
// kernel: my_conv2d.1
$region0: #{my_conv2d.1}
  #allocation0 [shape = 'u32[]', space=smem, size = 0x4, offset = 0x4, fixed_abs, tag = 'smem constant byte address 0x4 - core index']
  #allocation1 [shape = 'u32[144,128]{1,0:T(1,128)}', space=vmem, size = 0x12000, scoped, tag = 'internal scratch']
  %s0 = inlined_call_operand.vmem [shape: bf16[512,36], index: 0, kind: input, shape index: {}]
  %s1 = inlined_call_operand.vmem [shape: bf16[36,128], index: 1, kind: input, shape index: {}]
  %s2 = inlined_call_operand.vmem [shape: f32[1,128], index: 2, kind: input, shape index: {}]
  %s3 = inlined_call_operand.vmem [shape: bf16[512,128], index: 3, kind: output, shape index: {}]
  %s4 = sld [smem:[#allocation0]]
  $region45: #{my_conv2d.1} parent=0
    _
  %s6 = ssub.s32 1, %s4
  %s7 = scalar_select 0, %s6, %s4
  loop: start=0, step=1, limit=4
  $region2: #{my_conv2d.1} parent=0 // loop_pre_header
    _
  $region3: #{my_conv2d.1} parent=0 // loop_header
    %s9 = sphi 0, %s13
    %p10 = scmp.ge.s32.totalorder %s9, 4
    %s19 = sphi 0, %s21
    %s22 = sphi 0, %s19
    %s23 = sphi 0, %s22
    %s39 = sphi 0, %s23
    %s43 = sphi 0, %s43
    %s45 = sphi 0, %s43
    %s46 = sphi 0, %s45
    %s60 = sphi 0, %s46
    %s64 = sphi 0, %s64
    %s66 = sphi 0, %s64
    %s67 = sphi 0, %s66
    %s81 = sphi 0, %s67
    %s87 = sphi 0, %s89
    %s90 = sphi 0, %s87
    %s91 = sphi 0, %s90
    %s107 = sphi 0, %s91
  $region4: #{my_conv2d.1} parent=0 // loop_header_branch
    %12 = sbr.rel (%p10) target = $region8
  $region5: #{my_conv2d.1} parent=0 // loop_body
    %s14 = ssub.s32 %s9, 1
    %s15 = ssub.s32 %s9, 2
    %s16 = sadd.s32 %s9, 1
    %s17 = ssub.s32 %s9, %s16
    %p18 = scmp.eq.s32.totalorder %s17, 0
    %s20 = sadd.s32 %s19, 1
    %s21 = scalar_select %p18, %s19, %s20
    %p24 = pneg %p18
    %p25 = scmp.eq.s32.totalorder %s9, 1
    %p26 = por %p24, %p25
    %p27 = scmp.ne.s32.totalorder %s19, %s22
    %p28 = scmp.eq.s32.totalorder %s9, 0
    %p29 = por %p27, %p28
    %p30 = scmp.ne.s32.totalorder %s19, %s22
    %p31 = scmp.eq.s32.totalorder %s14, 1
    %p32 = por %p30, %p31
    %p33 = scmp.ne.s32.totalorder %s22, %s23
    %p34 = scmp.eq.s32.totalorder %s14, 0
    %p35 = por %p33, %p34
    %p36 = scmp.ne.s32.totalorder %s22, %s23
    %p37 = scmp.eq.s32.totalorder %s15, 1
    %p38 = por %p36, %p37
    %p40 = scmp.ne.s32.totalorder %s23, %s39
    %p41 = scmp.eq.s32.totalorder %s15, 0
    %p42 = por %p40, %p41
    %s44 = sadd.s32 %s43, 1
    %p47 = scmp.eq.s32.totalorder %s9, 1
    %p48 = scmp.ne.s32.totalorder %s43, %s45
    %p49 = scmp.eq.s32.totalorder %s9, 0
    %p50 = por %p48, %p49
    %p51 = scmp.ne.s32.totalorder %s43, %s45
    %p52 = scmp.eq.s32.totalorder %s14, 1
    %p53 = por %p51, %p52
    %p54 = scmp.ne.s32.totalorder %s45, %s46
    %p55 = scmp.eq.s32.totalorder %s14, 0
    %p56 = por %p54, %p55
    %p57 = scmp.ne.s32.totalorder %s45, %s46
    %p58 = scmp.eq.s32.totalorder %s15, 1
    %p59 = por %p57, %p58
    %p61 = scmp.ne.s32.totalorder %s46, %s60
    %p62 = scmp.eq.s32.totalorder %s15, 0
    %p63 = por %p61, %p62
    %s65 = sadd.s32 %s64, 1
    %p68 = scmp.eq.s32.totalorder %s9, 1
    %p69 = scmp.ne.s32.totalorder %s64, %s66
    %p70 = scmp.eq.s32.totalorder %s9, 0
    %p71 = por %p69, %p70
    %p72 = scmp.ne.s32.totalorder %s64, %s66
    %p73 = scmp.eq.s32.totalorder %s14, 1
    %p74 = por %p72, %p73
    %p75 = scmp.ne.s32.totalorder %s66, %s67
    %p76 = scmp.eq.s32.totalorder %s14, 0
    %p77 = por %p75, %p76
    %p78 = scmp.ne.s32.totalorder %s66, %s67
    %p79 = scmp.eq.s32.totalorder %s15, 1
    %p80 = por %p78, %p79
    %p82 = scmp.ne.s32.totalorder %s67, %s81
    %p83 = scmp.eq.s32.totalorder %s15, 0
    %p84 = por %p82, %p83
    %s85 = ssub.s32 %s9, %s16
    %p86 = scmp.eq.s32.totalorder %s85, 0
    %s88 = sadd.s32 %s87, 1
    %s89 = scalar_select %p86, %s87, %s88
    %p92 = pneg %p86
    %p93 = scmp.eq.s32.totalorder %s9, 1
    %p94 = por %p92, %p93
    %p95 = scmp.ne.s32.totalorder %s87, %s90
    %p96 = scmp.eq.s32.totalorder %s9, 0
    %p97 = por %p95, %p96
    %p98 = scmp.ne.s32.totalorder %s87, %s90
    %p99 = scmp.eq.s32.totalorder %s14, 1
    %p100 = por %p98, %p99
    %p101 = scmp.ne.s32.totalorder %s90, %s91
    %p102 = scmp.eq.s32.totalorder %s14, 0
    %p103 = por %p101, %p102
    %p104 = scmp.ne.s32.totalorder %s90, %s91
    %p105 = scmp.eq.s32.totalorder %s15, 1
    %p106 = por %p104, %p105
    %p108 = scmp.ne.s32.totalorder %s91, %s107
    %p109 = scmp.eq.s32.totalorder %s15, 0
    %p110 = por %p108, %p109
    %p111 = scmp.le.s32.totalorder 1, %s9
    %p112 = scmp.lt.s32.totalorder %s9, 3
    %p113 = pnand %p111, %p112
    %p114 = pneg %p113
    // Predicated region
    $region9: #{my_conv2d.1} parent=5 // pred_check
      _
    $region10: #{my_conv2d.1} parent=5 // pred_check_branch
      %116 = sbr.rel (%p113) target = $region12
    $region11: #{my_conv2d.1} parent=5 // pred_region
      %s117 = ssub.s32 %s9, 1
      // Predicated region
      $region13: #{my_conv2d.1} parent=11 // pred_check
        %p118 = pneg %p56
      $region14: #{my_conv2d.1} parent=11 // pred_check_branch
        %120 = sbr.rel (%p118) target = $region16
      $region15: #{my_conv2d.1} parent=11 // pred_region
        _
      $region16: #{my_conv2d.1} parent=11 // pred_fallthru
        _
      // Predicated region
      $region17: #{my_conv2d.1} parent=11 // pred_check
        %p121 = pneg %p77
      $region18: #{my_conv2d.1} parent=11 // pred_check_branch
        %123 = sbr.rel (%p121) target = $region20
      $region19: #{my_conv2d.1} parent=11 // pred_region
        _
      $region20: #{my_conv2d.1} parent=11 // pred_fallthru
        _
    $region12: #{my_conv2d.1} parent=5 // pred_fallthru
      _
    %p124 = scmp.lt.s32.totalorder %s9, 2
    // Predicated region
    $region21: #{my_conv2d.1} parent=5 // pred_check
      %p125 = pneg %p124
    $region22: #{my_conv2d.1} parent=5 // pred_check_branch
      %127 = sbr.rel (%p125) target = $region24
    $region23: #{my_conv2d.1} parent=5 // pred_region
      // Predicated region
      $region25: #{my_conv2d.1} parent=23 // pred_check
        %p128 = pneg %p29
      $region26: #{my_conv2d.1} parent=23 // pred_check_branch
        %130 = sbr.rel (%p128) target = $region28
      $region27: #{my_conv2d.1} parent=23 // pred_region
        %s131 = smul.u32 32, %s9
        %p132 = scmp.lt.s32.totalorder %s131, 63
        %s133 = scalar_select %p132, %s131, 63
        %s134 = smul.addr %s133, 4
        %s135 = scalar_lea.vmem %s0, %s134
        %s136 = smul.u32 32, %s9
      $region28: #{my_conv2d.1} parent=23 // pred_fallthru
        _
    $region24: #{my_conv2d.1} parent=5 // pred_fallthru
      _
    %p137 = scmp.le.s32.totalorder 1, %s9
    %p138 = scmp.lt.s32.totalorder %s9, 3
    %p139 = pnand %p137, %p138
    %p140 = pneg %p139
    // Predicated region
    $region29: #{my_conv2d.1} parent=5 // pred_check
      _
    $region30: #{my_conv2d.1} parent=5 // pred_check_branch
      %142 = sbr.rel (%p139) target = $region32
    $region31: #{my_conv2d.1} parent=5 // pred_region
      %s143 = ssub.s32 %s9, 1
      %s144 = smul.u32 32, %s14
      %p145 = scmp.lt.s32.totalorder %s144, 63
      %s146 = scalar_select %p145, %s144, 63
      %s147 = smul.addr %s146, 4
      %s148 = scalar_lea.vmem %s0, %s147
      %p149 = pneg %p35
      %p150 = pneg %p32
      %p151 = pneg %p56
      %p152 = pneg %p53
      %p153 = pneg %p77
      %p154 = pneg %p74
      %p155 = pneg %p103
      %p156 = pneg %p100
      %s157 = smul.u32 32, %s14
      %p158 = scmp.lt.s32.totalorder %s157, 63
      %s159 = scalar_select %p158, %s157, 63
      %s160 = smul.addr %s159, 4
      %s161 = scalar_lea.vmem %s3, %s160
      %s162 = smul.u32 32, %s14
      %p163 = scmp.lt.s32.totalorder %s162, 63
      %s164 = scalar_select %p163, %s162, 63
      %s165 = smul.addr %s164, 4
      %s166 = scalar_lea.vmem %s0, %s165
      %s167 = smul.u32 32, %s14
      %s168 = smul.u32 32, %s14
      %p169 = scmp.lt.s32.totalorder %s168, 63
      %s170 = scalar_select %p169, %s168, 63
      %s171 = smul.addr %s170, 4
      %s172 = scalar_lea.vmem %s3, %s171
      %s173 = smul.u32 32, %s14
      %v175 = vld [vmem:[%s166] sm:$0xf]
      %v176 = vld [vmem:[%s166 + $0x4] sm:$0xf]
      %v177 = vld [vmem:[%s166 + $0x8] sm:$0xf]
      %v178 = vld [vmem:[%s166 + $0xc] sm:$0xf]
      %v179 = vld [vmem:[%s166 + $0x10] sm:$0xf]
      %v180 = vld [vmem:[%s166 + $0x14] sm:$0xf]
      %v181 = vld [vmem:[%s166 + $0x18] sm:$0xf]
      %v182 = vld [vmem:[%s166 + $0x1c] sm:$0xf]
      %v183 = vld [vmem:[%s166 + $0x20] sm:$0xf]
      %v184 = vld [vmem:[%s166 + $0x24] sm:$0xf]
      %v185 = vld [vmem:[%s166 + $0x28] sm:$0xf]
      %v186 = vld [vmem:[%s166 + $0x2c] sm:$0xf]
      %v187 = vld [vmem:[%s166 + $0x30] sm:$0xf]
      %v188 = vld [vmem:[%s166 + $0x34] sm:$0xf]
      %v189 = vld [vmem:[%s166 + $0x38] sm:$0xf]
      %v190 = vld [vmem:[%s166 + $0x3c] sm:$0xf]
      %v191 = vld [vmem:[%s166 + $0x40] sm:$0xf]
      %v192 = vld [vmem:[%s166 + $0x44] sm:$0xf]
      %v193 = vld [vmem:[%s166 + $0x48] sm:$0xf]
      %v194 = vld [vmem:[%s166 + $0x4c] sm:$0xf]
      %v195 = vld [vmem:[%s166 + $0x50] sm:$0xf]
      %v196 = vld [vmem:[%s166 + $0x54] sm:$0xf]
      %v197 = vld [vmem:[%s166 + $0x58] sm:$0xf]
      %v198 = vld [vmem:[%s166 + $0x5c] sm:$0xf]
      %v199 = vld [vmem:[%s166 + $0x60] sm:$0xf]
      %v200 = vld [vmem:[%s166 + $0x64] sm:$0xf]
      %v201 = vld [vmem:[%s166 + $0x68] sm:$0xf]
      %v202 = vld [vmem:[%s166 + $0x6c] sm:$0xf]
      %v203 = vld [vmem:[%s166 + $0x70] sm:$0xf]
      %v204 = vld [vmem:[%s166 + $0x74] sm:$0xf]
      %v205 = vld [vmem:[%s166 + $0x78] sm:$0xf]
      %v206 = vld [vmem:[%s166 + $0x7c] sm:$0xf]
      %v207 = vld [vmem:[%s1] sm:$0xf]
      %v208 = vld [vmem:[%s1 + $0x4] sm:$0xf]
      %v209 = vld [vmem:[%s1 + $0x8] sm:$0xf]
      %v210 = vld [vmem:[%s1 + $0xc] sm:$0xf]
      %v211 = vld [vmem:[%s1 + $0x10] sm:$0x3]
      %v212 = vld [vmem:[%s2] sm:$0x1]
      %v214 = vlaneseq
      %v215 = vshrl.u32 %v214, 7
      %v216 = vsub.s32 0, %v215
      %v217 = vrot.slane %v212, %v216
      %v251 = vunpack.c.l.b16 %v175
      %v252 = vunpack.c.l.b16 %v176
      %v253 = vunpack.c.l.b16 %v177
      %v254 = vunpack.c.l.b16 %v178
      %v255 = vunpack.c.l.b16 %v179
      %v256 = vunpack.c.l.b16 %v180
      %v257 = vunpack.c.l.b16 %v181
      %v258 = vunpack.c.l.b16 %v182
      %v259 = vunpack.c.l.b16 %v183
      %v260 = vunpack.c.l.b16 %v184
      %v261 = vunpack.c.l.b16 %v185
      %v262 = vunpack.c.l.b16 %v186
      %v263 = vunpack.c.l.b16 %v187
      %v264 = vunpack.c.l.b16 %v188
      %v265 = vunpack.c.l.b16 %v189
      %v266 = vunpack.c.l.b16 %v190
      %v267 = vunpack.c.l.b16 %v191
      %v268 = vunpack.c.l.b16 %v192
      %v269 = vunpack.c.l.b16 %v193
      %v270 = vunpack.c.l.b16 %v194
      %v271 = vunpack.c.l.b16 %v195
      %v272 = vunpack.c.l.b16 %v196
      %v273 = vunpack.c.l.b16 %v197
      %v274 = vunpack.c.l.b16 %v198
      %v275 = vunpack.c.l.b16 %v199
      %v276 = vunpack.c.l.b16 %v200
      %v277 = vunpack.c.l.b16 %v201
      %v278 = vunpack.c.l.b16 %v202
      %v279 = vunpack.c.l.b16 %v203
      %v280 = vunpack.c.l.b16 %v204
      %v281 = vunpack.c.l.b16 %v205
      %v282 = vunpack.c.l.b16 %v206
      %v283 = vpack.c.b16 %v252, %v251
      %v284 = vpack.c.b16 %v254, %v253
      %v285 = vpack.c.b16 %v256, %v255
      %v286 = vpack.c.b16 %v258, %v257
      %v287 = vpack.c.b16 %v260, %v259
      %v288 = vpack.c.b16 %v262, %v261
      %v289 = vpack.c.b16 %v264, %v263
      %v290 = vpack.c.b16 %v266, %v265
      %v291 = vpack.c.b16 %v268, %v267
      %v292 = vpack.c.b16 %v270, %v269
      %v293 = vpack.c.b16 %v272, %v271
      %v294 = vpack.c.b16 %v274, %v273
      %v295 = vpack.c.b16 %v276, %v275
      %v296 = vpack.c.b16 %v278, %v277
      %v297 = vpack.c.b16 %v280, %v279
      %v298 = vpack.c.b16 %v282, %v281
      %v304 = vunpack.c.l.b16 %v207
      %v305 = vunpack.c.l.b16 %v208
      %v306 = vunpack.c.l.b16 %v209
      %v307 = vunpack.c.l.b16 %v210
      %v308 = vunpack.c.l.b16 %v211
      %v309 = vpack.c.b16 %v305, %v304
      %v310 = vpack.c.b16 %v307, %v306
      %v311 = vpack.c.b16 %v308, %v308
      %vm314 = vcmask 293888
      %v316 = vsel %vm314, %v283, 0
      %v319 = vsel %vm314, %v284, 0
      %v322 = vsel %vm314, %v285, 0
      %v325 = vsel %vm314, %v286, 0
      %v328 = vsel %vm314, %v287, 0
      %v331 = vsel %vm314, %v288, 0
      %v334 = vsel %vm314, %v289, 0
      %v337 = vsel %vm314, %v290, 0
      %v340 = vsel %vm314, %v291, 0
      %v343 = vsel %vm314, %v292, 0
      %v346 = vsel %vm314, %v293, 0
      %v349 = vsel %vm314, %v294, 0
      %v352 = vsel %vm314, %v295, 0
      %v355 = vsel %vm314, %v296, 0
      %v358 = vsel %vm314, %v297, 0
      %v361 = vsel %vm314, %v298, 0
      %vm363 = vcmask 1041408
      %v365 = vsel %vm363, %v311, 0
      %367 = vmatprep.subr.bf16.mxu0 0
      %368 = vmatpush1.bf16.msra.mxu0 0
      %369 = vmatprep.subr.bf16.mxu0 0
      %370 = vmatpush1.bf16.msra.mxu0 0
      %371 = vmatprep.subr.bf16.mxu0 0
      %372 = vmatpush1.bf16.msra.mxu0 0
      %373 = vmatprep.subr.bf16.mxu0 0
      %374 = vmatpush1.bf16.msra.mxu0 0
      %375 = vmatprep.subr.bf16.mxu0 0
      %376 = vmatpush1.bf16.msra.mxu0 0
      %377 = vmatprep.subr.bf16.mxu0 0
      %378 = vmatpush1.bf16.msra.mxu0 %v365
      %379 = vmatprep.subr.bf16.mxu0 0
      %380 = vmatpush1.bf16.msra.mxu0 %v310
      %381 = vmatprep.subr.bf16.mxu0 0
      %382 = vmatpush1.bf16.msra.mxu0 %v309
      %383 = vmatprep.subr.bf16.mxu0 0
      %384 = vmatpush2.bf16.msra.mxu0 0
      %385 = vmatprep.subr.bf16.mxu0 0
      %386 = vmatpush2.bf16.msra.mxu0 0
      %387 = vmatprep.subr.bf16.mxu0 0
      %388 = vmatpush2.bf16.msra.mxu0 0
      %389 = vmatprep.subr.bf16.mxu0 0
      %390 = vmatpush2.bf16.msra.mxu0 0
      %391 = vmatprep.subr.bf16.mxu0 0
      %392 = vmatpush2.bf16.msra.mxu0 0
      %393 = vmatprep.subr.bf16.mxu0 0
      %394 = vmatpush2.bf16.msra.mxu0 0
      %395 = vmatprep.subr.bf16.mxu0 0
      %396 = vmatpush2.bf16.msra.mxu0 0
      %397 = vmatprep.subr.bf16.mxu0 0
      %398 = vmatpush2.bf16.msra.mxu0 0
      %399 = vmatprep.mubr.bf16.mxu0 0
      %400 = vmatmul.mubr.bf16.gmra.mxu0 %v316
      %v401 = vpop.f32.mrf.mxu0
      %v402 = vadd.f32 %v217, %v401
      %v403 = vpop.f32.mrf.mxu0
      %v404 = vpop.f32.mrf.mxu0
      %v405 = vadd.f32 %v217, %v404
      %v406 = vpop.f32.mrf.mxu0
      %407 = vmatprep.mubr.bf16.mxu0 0
      %408 = vmatmul.mubr.bf16.gmra.mxu0 %v319
      %v409 = vpop.f32.mrf.mxu0
      %v410 = vadd.f32 %v217, %v409
      %v411 = vpop.f32.mrf.mxu0
      %v412 = vpop.f32.mrf.mxu0
      %v413 = vadd.f32 %v217, %v412
      %v414 = vpop.f32.mrf.mxu0
      %415 = vmatprep.mubr.bf16.mxu0 0
      %416 = vmatmul.mubr.bf16.gmra.mxu0 %v322
      %v417 = vpop.f32.mrf.mxu0
      %v418 = vadd.f32 %v217, %v417
      %v419 = vpop.f32.mrf.mxu0
      %v420 = vpop.f32.mrf.mxu0
      %v421 = vadd.f32 %v217, %v420
      %v422 = vpop.f32.mrf.mxu0
      %423 = vmatprep.mubr.bf16.mxu0 0
      %424 = vmatmul.mubr.bf16.gmra.mxu0 %v325
      %v425 = vpop.f32.mrf.mxu0
      %v426 = vadd.f32 %v217, %v425
      %v427 = vpop.f32.mrf.mxu0
      %v428 = vpop.f32.mrf.mxu0
      %v429 = vadd.f32 %v217, %v428
      %v430 = vpop.f32.mrf.mxu0
      %431 = vmatprep.mubr.bf16.mxu0 0
      %432 = vmatmul.mubr.bf16.gmra.mxu0 %v328
      %v433 = vpop.f32.mrf.mxu0
      %v434 = vadd.f32 %v217, %v433
      %v435 = vpop.f32.mrf.mxu0
      %v436 = vpop.f32.mrf.mxu0
      %v437 = vadd.f32 %v217, %v436
      %v438 = vpop.f32.mrf.mxu0
      %439 = vmatprep.mubr.bf16.mxu0 0
      %440 = vmatmul.mubr.bf16.gmra.mxu0 %v331
      %v441 = vpop.f32.mrf.mxu0
      %v442 = vadd.f32 %v217, %v441
      %v443 = vpop.f32.mrf.mxu0
      %v444 = vpop.f32.mrf.mxu0
      %v445 = vadd.f32 %v217, %v444
      %v446 = vpop.f32.mrf.mxu0
      %447 = vmatprep.mubr.bf16.mxu0 0
      %448 = vmatmul.mubr.bf16.gmra.mxu0 %v334
      %v449 = vpop.f32.mrf.mxu0
      %v450 = vadd.f32 %v217, %v449
      %v451 = vpop.f32.mrf.mxu0
      %v452 = vpop.f32.mrf.mxu0
      %v453 = vadd.f32 %v217, %v452
      %v454 = vpop.f32.mrf.mxu0
      %455 = vmatprep.mubr.bf16.mxu0 0
      %456 = vmatmul.mubr.bf16.gmra.mxu0 %v337
      %v457 = vpop.f32.mrf.mxu0
      %v458 = vadd.f32 %v217, %v457
      %v459 = vpop.f32.mrf.mxu0
      %v460 = vpop.f32.mrf.mxu0
      %v461 = vadd.f32 %v217, %v460
      %v462 = vpop.f32.mrf.mxu0
      %463 = vmatprep.mubr.bf16.mxu0 0
      %464 = vmatmul.mubr.bf16.gmra.mxu0 %v340
      %v465 = vpop.f32.mrf.mxu0
      %v466 = vadd.f32 %v217, %v465
      %v467 = vpop.f32.mrf.mxu0
      %v468 = vpop.f32.mrf.mxu0
      %v469 = vadd.f32 %v217, %v468
      %v470 = vpop.f32.mrf.mxu0
      %471 = vmatprep.mubr.bf16.mxu0 0
      %472 = vmatmul.mubr.bf16.gmra.mxu0 %v343
      %v473 = vpop.f32.mrf.mxu0
      %v474 = vadd.f32 %v217, %v473
      %v475 = vpop.f32.mrf.mxu0
      %v476 = vpop.f32.mrf.mxu0
      %v477 = vadd.f32 %v217, %v476
      %v478 = vpop.f32.mrf.mxu0
      %479 = vmatprep.mubr.bf16.mxu0 0
      %480 = vmatmul.mubr.bf16.gmra.mxu0 %v346
      %v481 = vpop.f32.mrf.mxu0
      %v482 = vadd.f32 %v217, %v481
      %v483 = vpop.f32.mrf.mxu0
      %v484 = vpop.f32.mrf.mxu0
      %v485 = vadd.f32 %v217, %v484
      %v486 = vpop.f32.mrf.mxu0
      %487 = vmatprep.mubr.bf16.mxu0 0
      %488 = vmatmul.mubr.bf16.gmra.mxu0 %v349
      %v489 = vpop.f32.mrf.mxu0
      %v490 = vadd.f32 %v217, %v489
      %v491 = vpop.f32.mrf.mxu0
      %v492 = vpop.f32.mrf.mxu0
      %v493 = vadd.f32 %v217, %v492
      %v494 = vpop.f32.mrf.mxu0
      %495 = vmatprep.mubr.bf16.mxu0 0
      %496 = vmatmul.mubr.bf16.gmra.mxu0 %v352
      %v497 = vpop.f32.mrf.mxu0
      %v498 = vadd.f32 %v217, %v497
      %v499 = vpop.f32.mrf.mxu0
      %v500 = vpop.f32.mrf.mxu0
      %v501 = vadd.f32 %v217, %v500
      %v502 = vpop.f32.mrf.mxu0
      %503 = vmatprep.mubr.bf16.mxu0 0
      %504 = vmatmul.mubr.bf16.gmra.mxu0 %v355
      %v505 = vpop.f32.mrf.mxu0
      %v506 = vadd.f32 %v217, %v505
      %v507 = vpop.f32.mrf.mxu0
      %v508 = vpop.f32.mrf.mxu0
      %v509 = vadd.f32 %v217, %v508
      %v510 = vpop.f32.mrf.mxu0
      %511 = vmatprep.mubr.bf16.mxu0 0
      %512 = vmatmul.mubr.bf16.gmra.mxu0 %v358
      %v513 = vpop.f32.mrf.mxu0
      %v514 = vadd.f32 %v217, %v513
      %v515 = vpop.f32.mrf.mxu0
      %v516 = vpop.f32.mrf.mxu0
      %v517 = vadd.f32 %v217, %v516
      %v518 = vpop.f32.mrf.mxu0
      %519 = vmatprep.mubr.bf16.mxu0 0
      %520 = vmatmul.mubr.bf16.gmra.mxu0 %v361
      %v521 = vpop.f32.mrf.mxu0
      %v522 = vadd.f32 %v217, %v521
      %v523 = vpop.f32.mrf.mxu0
      %v524 = vpop.f32.mrf.mxu0
      %v525 = vadd.f32 %v217, %v524
      %v526 = vpop.f32.mrf.mxu0
      %527 = vdwg.mxu0
      %v528 = vpack.c.bf16 %v405, %v402
      %v529 = vpack.c.bf16 %v413, %v410
      %v530 = vpack.c.bf16 %v421, %v418
      %v531 = vpack.c.bf16 %v429, %v426
      %v532 = vpack.c.bf16 %v437, %v434
      %v533 = vpack.c.bf16 %v445, %v442
      %v534 = vpack.c.bf16 %v453, %v450
      %v535 = vpack.c.bf16 %v461, %v458
      %v536 = vpack.c.bf16 %v469, %v466
      %v537 = vpack.c.bf16 %v477, %v474
      %v538 = vpack.c.bf16 %v485, %v482
      %v539 = vpack.c.bf16 %v493, %v490
      %v540 = vpack.c.bf16 %v501, %v498
      %v541 = vpack.c.bf16 %v509, %v506
      %v542 = vpack.c.bf16 %v517, %v514
      %v543 = vpack.c.bf16 %v525, %v522
      %v560 = vunpack.c.l.b16 %v528
      %v561 = vunpack.c.h.b16 %v528
      %v562 = vunpack.c.l.b16 %v529
      %v563 = vunpack.c.h.b16 %v529
      %v564 = vunpack.c.l.b16 %v530
      %v565 = vunpack.c.h.b16 %v530
      %v566 = vunpack.c.l.b16 %v531
      %v567 = vunpack.c.h.b16 %v531
      %v568 = vunpack.c.l.b16 %v532
      %v569 = vunpack.c.h.b16 %v532
      %v570 = vunpack.c.l.b16 %v533
      %v571 = vunpack.c.h.b16 %v533
      %v572 = vunpack.c.l.b16 %v534
      %v573 = vunpack.c.h.b16 %v534
      %v574 = vunpack.c.l.b16 %v535
      %v575 = vunpack.c.h.b16 %v535
      %v576 = vunpack.c.l.b16 %v536
      %v577 = vunpack.c.h.b16 %v536
      %v578 = vunpack.c.l.b16 %v537
      %v579 = vunpack.c.h.b16 %v537
      %v580 = vunpack.c.l.b16 %v538
      %v581 = vunpack.c.h.b16 %v538
      %v582 = vunpack.c.l.b16 %v539
      %v583 = vunpack.c.h.b16 %v539
      %v584 = vunpack.c.l.b16 %v540
      %v585 = vunpack.c.h.b16 %v540
      %v586 = vunpack.c.l.b16 %v541
      %v587 = vunpack.c.h.b16 %v541
      %v588 = vunpack.c.l.b16 %v542
      %v589 = vunpack.c.h.b16 %v542
      %v590 = vunpack.c.l.b16 %v543
      %v591 = vunpack.c.h.b16 %v543
      %v592 = vpack.c.b16 %v560, %v560
      %v593 = vpack.c.b16 %v561, %v561
      %v594 = vpack.c.b16 %v562, %v562
      %v595 = vpack.c.b16 %v563, %v563
      %v596 = vpack.c.b16 %v564, %v564
      %v597 = vpack.c.b16 %v565, %v565
      %v598 = vpack.c.b16 %v566, %v566
      %v599 = vpack.c.b16 %v567, %v567
      %v600 = vpack.c.b16 %v568, %v568
      %v601 = vpack.c.b16 %v569, %v569
      %v602 = vpack.c.b16 %v570, %v570
      %v603 = vpack.c.b16 %v571, %v571
      %v604 = vpack.c.b16 %v572, %v572
      %v605 = vpack.c.b16 %v573, %v573
      %v606 = vpack.c.b16 %v574, %v574
      %v607 = vpack.c.b16 %v575, %v575
      %v608 = vpack.c.b16 %v576, %v576
      %v609 = vpack.c.b16 %v577, %v577
      %v610 = vpack.c.b16 %v578, %v578
      %v611 = vpack.c.b16 %v579, %v579
      %v612 = vpack.c.b16 %v580, %v580
      %v613 = vpack.c.b16 %v581, %v581
      %v614 = vpack.c.b16 %v582, %v582
      %v615 = vpack.c.b16 %v583, %v583
      %v616 = vpack.c.b16 %v584, %v584
      %v617 = vpack.c.b16 %v585, %v585
      %v618 = vpack.c.b16 %v586, %v586
      %v619 = vpack.c.b16 %v587, %v587
      %v620 = vpack.c.b16 %v588, %v588
      %v621 = vpack.c.b16 %v589, %v589
      %v622 = vpack.c.b16 %v590, %v590
      %v623 = vpack.c.b16 %v591, %v591
      %656 = vst [vmem:[%s172] sm:$0xf] %v592
      %657 = vst [vmem:[%s172 + $0x4] sm:$0xf] %v593
      %658 = vst [vmem:[%s172 + $0x8] sm:$0xf] %v594
      %659 = vst [vmem:[%s172 + $0xc] sm:$0xf] %v595
      %660 = vst [vmem:[%s172 + $0x10] sm:$0xf] %v596
      %661 = vst [vmem:[%s172 + $0x14] sm:$0xf] %v597
      %662 = vst [vmem:[%s172 + $0x18] sm:$0xf] %v598
      %663 = vst [vmem:[%s172 + $0x1c] sm:$0xf] %v599
      %664 = vst [vmem:[%s172 + $0x20] sm:$0xf] %v600
      %665 = vst [vmem:[%s172 + $0x24] sm:$0xf] %v601
      %666 = vst [vmem:[%s172 + $0x28] sm:$0xf] %v602
      %667 = vst [vmem:[%s172 + $0x2c] sm:$0xf] %v603
      %668 = vst [vmem:[%s172 + $0x30] sm:$0xf] %v604
      %669 = vst [vmem:[%s172 + $0x34] sm:$0xf] %v605
      %670 = vst [vmem:[%s172 + $0x38] sm:$0xf] %v606
      %671 = vst [vmem:[%s172 + $0x3c] sm:$0xf] %v607
      %672 = vst [vmem:[%s172 + $0x40] sm:$0xf] %v608
      %673 = vst [vmem:[%s172 + $0x44] sm:$0xf] %v609
      %674 = vst [vmem:[%s172 + $0x48] sm:$0xf] %v610
      %675 = vst [vmem:[%s172 + $0x4c] sm:$0xf] %v611
      %676 = vst [vmem:[%s172 + $0x50] sm:$0xf] %v612
      %677 = vst [vmem:[%s172 + $0x54] sm:$0xf] %v613
      %678 = vst [vmem:[%s172 + $0x58] sm:$0xf] %v614
      %679 = vst [vmem:[%s172 + $0x5c] sm:$0xf] %v615
      %680 = vst [vmem:[%s172 + $0x60] sm:$0xf] %v616
      %681 = vst [vmem:[%s172 + $0x64] sm:$0xf] %v617
      %682 = vst [vmem:[%s172 + $0x68] sm:$0xf] %v618
      %683 = vst [vmem:[%s172 + $0x6c] sm:$0xf] %v619
      %684 = vst [vmem:[%s172 + $0x70] sm:$0xf] %v620
      %685 = vst [vmem:[%s172 + $0x74] sm:$0xf] %v621
      %686 = vst [vmem:[%s172 + $0x78] sm:$0xf] %v622
      %687 = vst [vmem:[%s172 + $0x7c] sm:$0xf] %v623
      %s688 = smul.u32 32, %s14
      %p689 = scmp.lt.s32.totalorder %s688, 63
      %s690 = scalar_select %p689, %s688, 63
      %s691 = smul.addr %s690, 4
      %s692 = scalar_lea.vmem %s3, %s691
      // Predicated region
      $region33: #{my_conv2d.1} parent=31 // pred_check
        %p693 = pneg %p100
      $region34: #{my_conv2d.1} parent=31 // pred_check_branch
        %695 = sbr.rel (%p693) target = $region36
      $region35: #{my_conv2d.1} parent=31 // pred_region
        %s696 = smul.u32 32, %s14
      $region36: #{my_conv2d.1} parent=31 // pred_fallthru
        _
    $region32: #{my_conv2d.1} parent=5 // pred_fallthru
      _
    %p697 = scmp.le.s32.totalorder 2, %s9
    // Predicated region
    $region37: #{my_conv2d.1} parent=5 // pred_check
      %p698 = pneg %p697
    $region38: #{my_conv2d.1} parent=5 // pred_check_branch
      %700 = sbr.rel (%p698) target = $region40
    $region39: #{my_conv2d.1} parent=5 // pred_region
      %s701 = ssub.s32 %s9, 2
      // Predicated region
      $region41: #{my_conv2d.1} parent=39 // pred_check
        %p702 = pneg %p106
      $region42: #{my_conv2d.1} parent=39 // pred_check_branch
        %704 = sbr.rel (%p702) target = $region44
      $region43: #{my_conv2d.1} parent=39 // pred_region
        %s705 = smul.u32 32, %s15
        %p706 = scmp.lt.s32.totalorder %s705, 63
        %s707 = scalar_select %p706, %s705, 63
        %s708 = smul.addr %s707, 4
        %s709 = scalar_lea.vmem %s3, %s708
      $region44: #{my_conv2d.1} parent=39 // pred_fallthru
        _
    $region40: #{my_conv2d.1} parent=5 // pred_fallthru
      _
  $region6: #{my_conv2d.1} parent=0 // loop_footer
    %s13 = sadd.s32 1, %s9
  $region7: #{my_conv2d.1} parent=0 // loop_footer_branch
    %8 = sbr.rel target = $region3
  $region8: #{my_conv2d.1} parent=0 // loop_exit
    _

</llo_original>
